<compile_context>
chip_gen: v7x
topology: tpu7x:2x2x1
jax: 0.10.0
libtpu: 0.0.40
codegen_flags: <defaults>
</compile_context>

<pallas_src>
import math
import functools

import jax
import jax.numpy as jnp
from jax.experimental import pallas as pl
from jax.experimental.pallas import tpu as pltpu

_LANE = 128


def _round_up(n, m):
    return ((n + m - 1) // m) * m


def _pad2(a, rows, cols):
    r, c = a.shape
    return jnp.pad(a, ((0, rows - r), (0, cols - c)))


@functools.lru_cache(maxsize=1)
def _vmem_limit_bytes():
    # ~3/4 of physical VMEM: 96 MiB on v5e/v6e (128 MiB), 48 MiB on v7x (64 MiB).
    cap = 64 * 1024 * 1024
    try:
        info = pltpu.get_tpu_info()
        cap = int(getattr(info, "vmem_capacity_bytes", cap)) or cap
    except Exception:
        pass
    return max(32 * 1024 * 1024, min((cap * 3) // 4, 96 * 1024 * 1024))


def _pick_dst_tile(n_pad):
    # dst axis is "parallel": keep >= 2 tiles whenever possible so both v7x TCs get work.
    if n_pad >= 512 and n_pad % 256 == 0:
        return 256
    return 128


def _pick_src_tile(n_pad):
    # reduction axis: biggest tile that divides n_pad (amortizes per-grid-step overhead).
    for t in (1024, 512, 256):
        if n_pad % t == 0:
            return t
    return 128


# ------------------------------ Pallas kernels ------------------------------

def _pre_linear_kernel(x_ref, wl_ref, wr_ref, b_ref, u_ref, r_ref):
    """Per-layer hoisted linears: u = x @ W_l (bf16 out), r = x @ W_r + b (f32 out)."""
    x = x_ref[...]
    u_ref[...] = jnp.dot(x, wl_ref[...],
                         preferred_element_type=jnp.float32).astype(u_ref.dtype)
    r_ref[...] = jnp.dot(x, wr_ref[...],
                         preferred_element_type=jnp.float32) + b_ref[...]


def _sage_agg_kernel(adj_ref, u_ref, r_ref, dinv_ref, o_ref, acc_ref, *, apply_relu):
    """Fused SAGEConv aggregation.

    grid = (dst tiles [parallel], src tiles [arbitrary]).
    acc accumulates adj_cnt @ u for this dst tile; the last src step runs a VPU-only epilogue
    o = relu(deg_inv * acc + r).
    """
    k = pl.program_id(1)

    @pl.when(k == 0)
    def _():
        acc_ref[...] = jnp.zeros_like(acc_ref)

    acc_ref[...] += jnp.dot(adj_ref[...], u_ref[...],
                            preferred_element_type=jnp.float32)

    @pl.when(k == pl.num_programs(1) - 1)
    def _():
        y = acc_ref[...] * dinv_ref[...] + r_ref[...]
        if apply_relu:
            y = jnp.maximum(y, 0.0)
        o_ref[...] = y.astype(o_ref.dtype)


def _pool_mlp_kernel(pool_ref, x_ref, cinv_ref, w1_ref, b1_ref, w2_ref, b2_ref,
                     o_ref, acc_ref):
    """global_mean_pool + Linear/ReLU + Linear, fused; reduces over src-node tiles."""
    k = pl.program_id(0)

    @pl.when(k == 0)
    def _():
        acc_ref[...] = jnp.zeros_like(acc_ref)

    acc_ref[...] += jnp.dot(pool_ref[...], x_ref[...],
                            preferred_element_type=jnp.float32)

    @pl.when(k == pl.num_programs(0) - 1)
    def _():
        pooled = acc_ref[...] * cinv_ref[...]
        h = jnp.dot(pooled, w1_ref[...], preferred_element_type=jnp.float32) + b1_ref[...]
        h = jnp.maximum(h, 0.0)
        o_ref[...] = jnp.dot(h, w2_ref[...], preferred_element_type=jnp.float32) + b2_ref[...]


# ------------------------------ wrappers ------------------------------

def sage_conv(h_bf16, adj_pad, dinv_pad, wl, wr, b, *, apply_relu, tile_dst, tile_src):
    n_pad, fin_pad = h_bf16.shape
    fout_pad = wl.shape[1]
    vmem = _vmem_limit_bytes()

    # hoisted linears: u = h @ W_l (bf16), r = h @ W_r + b (f32)
    u, r = pl.pallas_call(
        _pre_linear_kernel,
        out_shape=(jax.ShapeDtypeStruct((n_pad, fout_pad), jnp.bfloat16),
                   jax.ShapeDtypeStruct((n_pad, fout_pad), jnp.float32)),
        grid_spec=pltpu.PrefetchScalarGridSpec(
            num_scalar_prefetch=0,
            grid=(n_pad // tile_src,),
            in_specs=[
                pl.BlockSpec((tile_src, fin_pad), lambda i: (i, 0)),    # node features (bf16)
                pl.BlockSpec((fin_pad, fout_pad), lambda i: (0, 0)),    # W_l (bf16)
                pl.BlockSpec((fin_pad, fout_pad), lambda i: (0, 0)),    # W_r (bf16)
                pl.BlockSpec((1, fout_pad), lambda i: (0, 0)),          # bias (f32)
            ],
            out_specs=[pl.BlockSpec((tile_src, fout_pad), lambda i: (i, 0)),
                       pl.BlockSpec((tile_src, fout_pad), lambda i: (i, 0))],
        ),
        compiler_params=pltpu.CompilerParams(
            dimension_semantics=("parallel",), vmem_limit_bytes=vmem),
    )(h_bf16, wl, wr, b)

    kern = functools.partial(_sage_agg_kernel, apply_relu=apply_relu)
    return pl.pallas_call(
        kern,
        out_shape=jax.ShapeDtypeStruct((n_pad, fout_pad), jnp.bfloat16),
        grid_spec=pltpu.PrefetchScalarGridSpec(
            num_scalar_prefetch=0,
            grid=(n_pad // tile_dst, n_pad // tile_src),
            in_specs=[
                pl.BlockSpec((tile_dst, tile_src), lambda i, k: (i, k)),   # adj counts (bf16)
                pl.BlockSpec((tile_src, fout_pad), lambda i, k: (k, 0)),   # u (bf16)
                pl.BlockSpec((tile_dst, fout_pad), lambda i, k: (i, 0)),   # r (f32)
                pl.BlockSpec((tile_dst, 1), lambda i, k: (i, 0)),          # 1/deg (f32)
            ],
            out_specs=pl.BlockSpec((tile_dst, fout_pad), lambda i, k: (i, 0)),
            scratch_shapes=[pltpu.VMEM((tile_dst, fout_pad), jnp.float32)],
        ),
        compiler_params=pltpu.CompilerParams(
            dimension_semantics=("parallel", "arbitrary"),
            vmem_limit_bytes=vmem),
    )(adj_pad, u, r, dinv_pad)


def pool_mlp_head(h_bf16, pool_pad, cinv_pad, w1, b1, w2, b2, *, tile):
    n_pad, nhid_pad = h_bf16.shape
    g_pad = pool_pad.shape[0]
    nout_pad = w2.shape[1]
    vmem = _vmem_limit_bytes()
    return pl.pallas_call(
        _pool_mlp_kernel,
        out_shape=jax.ShapeDtypeStruct((g_pad, nout_pad), jnp.float32),
        grid_spec=pltpu.PrefetchScalarGridSpec(
            num_scalar_prefetch=0,
            grid=(n_pad // tile,),
            in_specs=[
                pl.BlockSpec((g_pad, tile), lambda k: (0, k)),          # one-hot pool (bf16)
                pl.BlockSpec((tile, nhid_pad), lambda k: (k, 0)),       # node features (bf16)
                pl.BlockSpec((g_pad, 1), lambda k: (0, 0)),             # 1/count (f32)
                pl.BlockSpec((nhid_pad, nhid_pad), lambda k: (0, 0)),   # mol_hidden1 W
                pl.BlockSpec((1, nhid_pad), lambda k: (0, 0)),          # mol_hidden1 b
                pl.BlockSpec((nhid_pad, nout_pad), lambda k: (0, 0)),   # mol_hidden2 W
                pl.BlockSpec((1, nout_pad), lambda k: (0, 0)),          # mol_hidden2 b
            ],
            out_specs=pl.BlockSpec((g_pad, nout_pad), lambda k: (0, 0)),
            scratch_shapes=[pltpu.VMEM((g_pad, nhid_pad), jnp.float32)],
        ),
        compiler_params=pltpu.CompilerParams(
            dimension_semantics=("arbitrary",),
            vmem_limit_bytes=vmem),
    )(pool_pad, h_bf16, cinv_pad, w1, b1, w2, b2)


# ------------------------------ parameter init ------------------------------

def _linear_params(key, fin, fout, bias=True):
    k1, k2 = jax.random.split(key)
    bound = 1.0 / math.sqrt(fin)
    w = jax.random.uniform(k1, (fin, fout), jnp.float32, -bound, bound)
    if bias:
        b = jax.random.uniform(k2, (1, fout), jnp.float32, -bound, bound)
    else:
        b = jnp.zeros((1, fout), jnp.float32)
    return {"w": w, "b": b}


def init_encoder_params(key, num_node_features, num_blocks, hidden, nhid, nout):
    # PyG GraphSAGE (BasicGNN) layer dims: in -> hidden -> ... -> hidden -> nhid
    dims = [num_node_features] + [hidden] * (num_blocks - 1) + [nhid]
    keys = jax.random.split(key, 2 * num_blocks + 2)
    convs = []
    for i in range(num_blocks):
        fin, fout = dims[i], dims[i + 1]
        lin_l = _linear_params(keys[2 * i], fin, fout, bias=True)       # aggregated neighbors
        lin_r = _linear_params(keys[2 * i + 1], fin, fout, bias=False)  # root (self) features
        convs.append({"wl": lin_l["w"], "bl": lin_l["b"], "wr": lin_r["w"]})
    return {
        "dims": dims,
        "convs": convs,
        "mol_hidden1": _linear_params(keys[-2], nhid, nhid),
        "mol_hidden2": _linear_params(keys[-1], nhid, nout),
    }


def pad_encoder_params(params, nout):
    dims = params["dims"]
    dims_pad = [_round_up(d, _LANE) for d in dims]
    convs_pad = []
    for i, c in enumerate(params["convs"]):
        fi, fo = dims_pad[i], dims_pad[i + 1]
        convs_pad.append({
            "wl": _pad2(c["wl"], fi, fo).astype(jnp.bfloat16),
            "wr": _pad2(c["wr"], fi, fo).astype(jnp.bfloat16),
            "b": _pad2(c["bl"], 1, fo),
        })
    nhid_pad = dims_pad[-1]
    nout_pad = _round_up(nout, _LANE)
    return {
        "convs": convs_pad,
        "w1": _pad2(params["mol_hidden1"]["w"], nhid_pad, nhid_pad),
        "b1": _pad2(params["mol_hidden1"]["b"], 1, nhid_pad),
        "w2": _pad2(params["mol_hidden2"]["w"], nhid_pad, nout_pad),
        "b2": _pad2(params["mol_hidden2"]["b"], 1, nout_pad),
    }


# ------------------------------ forward ------------------------------

def graphsage_encoder_forward(x_pad_bf16, adj_pad, dinv_pad, pool_pad, cinv_pad, pparams):
    n_pad = x_pad_bf16.shape[0]
    tile_dst = _pick_dst_tile(n_pad)
    tile_src = _pick_src_tile(n_pad)
    num_layers = len(pparams["convs"])
    h = x_pad_bf16
    for i, c in enumerate(pparams["convs"]):
        h = sage_conv(h, adj_pad, dinv_pad, c["wl"], c["wr"], c["b"],
                      apply_relu=(i < num_layers - 1),
                      tile_dst=tile_dst, tile_src=tile_src)
    return pool_mlp_head(h, pool_pad, cinv_pad,
                         pparams["w1"], pparams["b1"], pparams["w2"], pparams["b2"],
                         tile=tile_src)


# pure-JAX f32 reference (same semantics, unpadded) for sanity checking
def reference_forward(x, adj_mean, pool_mat, params):
    h = x
    n_layers = len(params["convs"])
    for i, c in enumerate(params["convs"]):
        h_new = (adj_mean @ h) @ c["wl"] + h @ c["wr"] + c["bl"]
        if i < n_layers - 1:
            h_new = jnp.maximum(h_new, 0.0)
        h = h_new
    pooled = pool_mat @ h
    hid = jnp.maximum(pooled @ params["mol_hidden1"]["w"] + params["mol_hidden1"]["b"], 0.0)
    return hid @ params["mol_hidden2"]["w"] + params["mol_hidden2"]["b"]


# ------------------------------ graph glue ------------------------------

def build_adj(edge_index, num_nodes):
    """Edge-count adjacency (dst rows, src cols) and per-row 1/deg (mean aggregation)."""
    src, dst = edge_index[0], edge_index[1]
    adj = jnp.zeros((num_nodes, num_nodes), jnp.float32)
    adj = adj.at[dst, src].add(1.0)
    deg = jnp.sum(adj, axis=1, keepdims=True)
    dinv = 1.0 / jnp.maximum(deg, 1.0)
    return adj, dinv


def build_pool(batch, num_graphs):
    """Binary one-hot graph-membership matrix and per-graph 1/count (global_mean_pool)."""
    onehot = (batch[None, :] == jnp.arange(num_graphs)[:, None]).astype(jnp.float32)
    counts = jnp.sum(onehot, axis=1, keepdims=True)
    cinv = 1.0 / jnp.maximum(counts, 1.0)
    return onehot, cinv


if __name__ == "__main__":
    # Small config consistent with the module
    num_node_features = 8
    num_blocks = 2          # GraphSAGE num_layers
    hidden_channels = 32
    nhid = 16
    nout = 8

    # N = 320 -> n_pad = 384 -> 3x3 aggregation grid: exercises the multi-step
    # accumulator (k > 0) path flagged in the review.
    N_PER_GRAPH, NUM_GRAPHS = 80, 4
    N = N_PER_GRAPH * NUM_GRAPHS

    key = jax.random.PRNGKey(0)
    k_x, k_p = jax.random.split(key)
    x = jax.random.normal(k_x, (N, num_node_features), jnp.float32)

    # Deterministic bidirectional chain within each graph (PyG [2, E] edge_index)
    edges = []
    for g in range(NUM_GRAPHS):
        base = g * N_PER_GRAPH
        for i in range(N_PER_GRAPH - 1):
            edges.append((base + i, base + i + 1))
            edges.append((base + i + 1, base + i))
    edge_index = jnp.asarray(edges, dtype=jnp.int32).T            # [2, E]
    batch = jnp.repeat(jnp.arange(NUM_GRAPHS, dtype=jnp.int32), N_PER_GRAPH)

    params = init_encoder_params(k_p, num_node_features, num_blocks,
                                 hidden_channels, nhid, nout)
    pparams = pad_encoder_params(params, nout)

    # lane-aligned padding of nodes / graphs / features
    n_pad = _round_up(N, _LANE)
    g_pad = _round_up(NUM_GRAPHS, 8)
    fin_pad = _round_up(num_node_features, _LANE)

    adj_cnt, dinv = build_adj(edge_index, N)                      # exact counts + 1/deg
    pool_onehot, cinv = build_pool(batch, NUM_GRAPHS)             # exact 0/1 + 1/count

    x_pad = _pad2(x, n_pad, fin_pad).astype(jnp.bfloat16)
    adj_pad = _pad2(adj_cnt, n_pad, n_pad).astype(jnp.bfloat16)   # small ints: exact in bf16
    dinv_pad = _pad2(dinv, n_pad, 1)
    pool_pad = _pad2(pool_onehot, g_pad, n_pad).astype(jnp.bfloat16)
    cinv_pad = _pad2(cinv, g_pad, 1)

    out_pad = graphsage_encoder_forward(x_pad, adj_pad, dinv_pad, pool_pad, cinv_pad, pparams)
    out_pad = jax.block_until_ready(out_pad)
    out = out_pad[:NUM_GRAPHS, :nout]

    assert out.shape == (NUM_GRAPHS, nout), out.shape
    assert bool(jnp.all(jnp.isfinite(out)))

    adj_mean = adj_cnt * dinv
    pool_mat = pool_onehot * cinv
    ref = reference_forward(x, adj_mean, pool_mat, params)
    max_err = float(jnp.max(jnp.abs(out - ref)))
    assert max_err < 1e-1, f"max abs error vs f32 reference: {max_err}"

    print("KERNEL_OK")
</pallas_src>

<mosaic_0001>
module attributes {stable_mosaic.version = 11 : i64} {
  func.func @_pre_linear_kernel(%arg0: i32, %arg1: memref<128x128xbf16, #tpu.memory_space<vmem>>, %arg2: memref<128x128xbf16, #tpu.memory_space<vmem>>, %arg3: memref<128x128xbf16, #tpu.memory_space<vmem>>, %arg4: memref<1x128xf32, #tpu.memory_space<vmem>>, %arg5: memref<128x128xbf16, #tpu.memory_space<vmem>>, %arg6: memref<128x128xf32, #tpu.memory_space<vmem>>) attributes {dimension_semantics = [#tpu.dimension_semantics<parallel>], iteration_bounds = array<i64: 3>, scalar_prefetch = 0 : i64, scratch_operands = 0 : i64, tpu.core_type = #tpu.core_type<tc>, window_params = [{transform_indices = @transform_0, window_bounds = array<i64: 128, 128>}, {pipeline_mode = #tpu.pipeline_mode<synchronous>, transform_indices = @transform_1, window_bounds = array<i64: 128, 128>}, {pipeline_mode = #tpu.pipeline_mode<synchronous>, transform_indices = @transform_2, window_bounds = array<i64: 128, 128>}, {pipeline_mode = #tpu.pipeline_mode<synchronous>, transform_indices = @transform_3, window_bounds = array<i64: 1, 128>}, {transform_indices = @transform_4, window_bounds = array<i64: 128, 128>}, {transform_indices = @transform_5, window_bounds = array<i64: 128, 128>}]} {
    %c0 = arith.constant 0 : index
    %c0_0 = arith.constant 0 : index
    %0 = vector.load %arg1[%c0, %c0_0] : memref<128x128xbf16, #tpu.memory_space<vmem>>, vector<128x128xbf16>
    %c0_1 = arith.constant 0 : index
    %c0_2 = arith.constant 0 : index
    %1 = vector.load %arg2[%c0_1, %c0_2] : memref<128x128xbf16, #tpu.memory_space<vmem>>, vector<128x128xbf16>
    %cst = arith.constant dense<0.000000e+00> : vector<128x128xf32>
    %2 = tpu.matmul %0, %1, %cst {dimension_numbers = #tpu.dot_dimension_numbers<[1], [0], [0], [1], [0, 0, 1, 1], [], []>} : vector<128x128xbf16>, vector<128x128xbf16>, vector<128x128xf32> -> vector<128x128xf32>
    %3 = arith.truncf %2 : vector<128x128xf32> to vector<128x128xbf16>
    %c0_3 = arith.constant 0 : index
    %c0_4 = arith.constant 0 : index
    %4 = vector.load %arg5[%c0_3, %c0_4] : memref<128x128xbf16, #tpu.memory_space<vmem>>, vector<128x128xbf16>
    tpu.vector_store %arg5[%c0_3, %c0_4], %3 {strides = array<i32>} : memref<128x128xbf16, #tpu.memory_space<vmem>>, vector<128x128xbf16>,
    %c0_5 = arith.constant 0 : index
    %c0_6 = arith.constant 0 : index
    %5 = vector.load %arg3[%c0_5, %c0_6] : memref<128x128xbf16, #tpu.memory_space<vmem>>, vector<128x128xbf16>
    %cst_7 = arith.constant dense<0.000000e+00> : vector<128x128xf32>
    %6 = tpu.matmul %0, %5, %cst_7 {dimension_numbers = #tpu.dot_dimension_numbers<[1], [0], [0], [1], [0, 0, 1, 1], [], []>} : vector<128x128xbf16>, vector<128x128xbf16>, vector<128x128xf32> -> vector<128x128xf32>
    %c0_8 = arith.constant 0 : index
    %c0_9 = arith.constant 0 : index
    %7 = vector.load %arg4[%c0_8, %c0_9] : memref<1x128xf32, #tpu.memory_space<vmem>>, vector<1x128xf32>
    %8 = vector.broadcast %7 : vector<1x128xf32> to vector<128x128xf32>
    %9 = arith.addf %6, %8 : vector<128x128xf32>
    %c0_10 = arith.constant 0 : index
    %c0_11 = arith.constant 0 : index
    %10 = vector.load %arg6[%c0_10, %c0_11] : memref<128x128xf32, #tpu.memory_space<vmem>>, vector<128x128xf32>
    tpu.vector_store %arg6[%c0_10, %c0_11], %9 {strides = array<i32>} : memref<128x128xf32, #tpu.memory_space<vmem>>, vector<128x128xf32>,
    return
  }
  func.func @transform_0(%arg0: i32) -> (i32, i32) {
    %c0_i32 = arith.constant 0 : i32
    %c0_i32_0 = arith.constant 0 : i32
    return %arg0, %c0_i32 : i32, i32
  }
  func.func @transform_1(%arg0: i32) -> (i32, i32) {
    %c0_i32 = arith.constant 0 : i32
    %c0_i32_0 = arith.constant 0 : i32
    %c0_i32_1 = arith.constant 0 : i32
    return %c0_i32, %c0_i32_0 : i32, i32
  }
  func.func @transform_2(%arg0: i32) -> (i32, i32) {
    %c0_i32 = arith.constant 0 : i32
    %c0_i32_0 = arith.constant 0 : i32
    %c0_i32_1 = arith.constant 0 : i32
    return %c0_i32, %c0_i32_0 : i32, i32
  }
  func.func @transform_3(%arg0: i32) -> (i32, i32) {
    %c0_i32 = arith.constant 0 : i32
    %c0_i32_0 = arith.constant 0 : i32
    %c0_i32_1 = arith.constant 0 : i32
    return %c0_i32, %c0_i32_0 : i32, i32
  }
  func.func @transform_4(%arg0: i32) -> (i32, i32) {
    %c0_i32 = arith.constant 0 : i32
    %c0_i32_0 = arith.constant 0 : i32
    return %arg0, %c0_i32 : i32, i32
  }
  func.func @transform_5(%arg0: i32) -> (i32, i32) {
    %c0_i32 = arith.constant 0 : i32
    %c0_i32_0 = arith.constant 0 : i32
    return %arg0, %c0_i32 : i32, i32
  }
}

</mosaic_0001>

<llo_original>
// kernel: tpu_custom_call.1
$region0: #{tpu_custom_call.1}
  #allocation0 [shape = 'u32[]', space=smem, size = 0x4, offset = 0x4, fixed_abs, tag = 'smem constant byte address 0x4 - core index']
  #allocation1 [shape = 'u32[144,128]{1,0:T(1,128)}', space=vmem, size = 0x12000, scoped, tag = 'internal scratch']
  %s0 = inlined_call_operand.hbm [shape: bf16[384,128], index: 0, kind: input, shape index: {}]
  %s1 = inlined_call_operand.hbm [shape: bf16[128,128], index: 1, kind: input, shape index: {}]
  %s2 = inlined_call_operand.hbm [shape: bf16[128,128], index: 2, kind: input, shape index: {}]
  %s3 = inlined_call_operand.vmem [shape: f32[1,128], index: 3, kind: input, shape index: {}]
  %s4 = inlined_call_operand.hbm [shape: bf16[384,128], index: 4, kind: output, shape index: {0}]
  %s5 = inlined_call_operand.hbm [shape: f32[384,128], index: 5, kind: output, shape index: {1}]
  %6 = xla_tuple %s4, %s5
  %s7 = sld [smem:[#allocation0]]
  $region69: #{tpu_custom_call.1} parent=0
    _
  %s9 = ssub.s32 1, %s7
  %s10 = scalar_select 0, %s9, %s7
  $region1: #{tpu_custom_call.1} parent=0
    #allocation2 [shape = 'u8[65536]{0}', space=vmem, size = 0x10000, scoped, tag = 'input window, operand 0']
    #allocation3 [shape = 's32[2]{0}', space=sflag, size = 0x8, scoped, tag = 'scoped memory for tpu_custom_call.1']
    #allocation4 [shape = 's32[2]{0}', space=sflag, size = 0x8, scoped, tag = 'scoped memory for tpu_custom_call.1']
    #allocation5 [shape = 'u8[32768]{0}', space=vmem, size = 0x8000, scoped, tag = 'input window, operand 1, single buffered']
    #allocation6 [shape = 's32[1]{0}', space=sflag, size = 0x4, scoped, tag = 'scoped memory for tpu_custom_call.1']
    #allocation7 [shape = 'u8[32768]{0}', space=vmem, size = 0x8000, scoped, tag = 'input window, operand 2, single buffered']
    #allocation8 [shape = 'u8[65536]{0}', space=vmem, size = 0x10000, scoped, tag = 'output window, operand 0']
    #allocation9 [shape = 'u8[131072]{0}', space=vmem, size = 0x20000, scoped, tag = 'output window, operand 1']
    #allocation10 [shape = 's32[2]{0}', space=sflag, size = 0x8, scoped, tag = 'scoped memory for tpu_custom_call.1']
    %11 = vsyncpa [#allocation3], 0
    %s12 = scalar_lea.sflag [#allocation3], 1
    %13 = vsyncpa %s12, 0
    %14 = vsyncpa [#allocation6], 0
    %15 = vsyncpa [#allocation4], 0
    %s16 = scalar_lea.sflag [#allocation4], 1
    %17 = vsyncpa %s16, 0
    %18 = vsyncpa [#allocation10], 0
    %s19 = scalar_lea.sflag [#allocation10], 1
    %20 = vsyncpa %s19, 0
    loop: start=0, step=1, limit=5
    $region2: #{tpu_custom_call.1} parent=1 // loop_pre_header
      _
    $region3: #{tpu_custom_call.1} parent=1 // loop_header
      %s22 = sphi 0, %s26
      %p23 = scmp.ge.s32.totalorder %s22, 5
      %s32 = sphi 0, %s34
      %s35 = sphi 0, %s32
      %s36 = sphi 0, %s35
      %s52 = sphi 0, %s36
      %s56 = sphi 0, %s56
      %s58 = sphi 0, %s56
      %s59 = sphi 0, %s58
      %s73 = sphi 0, %s59
      %s77 = sphi 0, %s77
      %s79 = sphi 0, %s77
      %s80 = sphi 0, %s79
      %s94 = sphi 0, %s80
      %s98 = sphi 0, %s98
      %s100 = sphi 0, %s98
      %s101 = sphi 0, %s100
      %s115 = sphi 0, %s101
      %s121 = sphi 0, %s123
      %s124 = sphi 0, %s121
      %s125 = sphi 0, %s124
      %s141 = sphi 0, %s125
      %s147 = sphi 0, %s149
      %s150 = sphi 0, %s147
      %s151 = sphi 0, %s150
      %s167 = sphi 0, %s151
    $region4: #{tpu_custom_call.1} parent=1 // loop_header_branch
      %25 = sbr.rel (%p23) target = $region8
    $region5: #{tpu_custom_call.1} parent=1 // loop_body
      %s27 = ssub.s32 %s22, 1
      %s28 = ssub.s32 %s22, 2
      %s29 = sadd.s32 %s22, 1
      %s30 = ssub.s32 %s22, %s29
      %p31 = scmp.eq.s32.totalorder %s30, 0
      %s33 = sadd.s32 %s32, 1
      %s34 = scalar_select %p31, %s32, %s33
      %p37 = pneg %p31
      %p38 = scmp.eq.s32.totalorder %s22, 2
      %p39 = por %p37, %p38
      %p40 = scmp.ne.s32.totalorder %s32, %s35
      %p41 = scmp.eq.s32.totalorder %s22, 0
      %p42 = por %p40, %p41
      %p43 = scmp.ne.s32.totalorder %s32, %s35
      %p44 = scmp.eq.s32.totalorder %s27, 2
      %p45 = por %p43, %p44
      %p46 = scmp.ne.s32.totalorder %s35, %s36
      %p47 = scmp.eq.s32.totalorder %s27, 0
      %p48 = por %p46, %p47
      %p49 = scmp.ne.s32.totalorder %s35, %s36
      %p50 = scmp.eq.s32.totalorder %s28, 2
      %p51 = por %p49, %p50
      %p53 = scmp.ne.s32.totalorder %s36, %s52
      %p54 = scmp.eq.s32.totalorder %s28, 0
      %p55 = por %p53, %p54
      %s57 = sadd.s32 %s56, 1
      %p60 = scmp.eq.s32.totalorder %s22, 2
      %p61 = scmp.ne.s32.totalorder %s56, %s58
      %p62 = scmp.eq.s32.totalorder %s22, 0
      %p63 = por %p61, %p62
      %p64 = scmp.ne.s32.totalorder %s56, %s58
      %p65 = scmp.eq.s32.totalorder %s27, 2
      %p66 = por %p64, %p65
      %p67 = scmp.ne.s32.totalorder %s58, %s59
      %p68 = scmp.eq.s32.totalorder %s27, 0
      %p69 = por %p67, %p68
      %p70 = scmp.ne.s32.totalorder %s58, %s59
      %p71 = scmp.eq.s32.totalorder %s28, 2
      %p72 = por %p70, %p71
      %p74 = scmp.ne.s32.totalorder %s59, %s73
      %p75 = scmp.eq.s32.totalorder %s28, 0
      %p76 = por %p74, %p75
      %s78 = sadd.s32 %s77, 1
      %p81 = scmp.eq.s32.totalorder %s22, 2
      %p82 = scmp.ne.s32.totalorder %s77, %s79
      %p83 = scmp.eq.s32.totalorder %s22, 0
      %p84 = por %p82, %p83
      %p85 = scmp.ne.s32.totalorder %s77, %s79
      %p86 = scmp.eq.s32.totalorder %s27, 2
      %p87 = por %p85, %p86
      %p88 = scmp.ne.s32.totalorder %s79, %s80
      %p89 = scmp.eq.s32.totalorder %s27, 0
      %p90 = por %p88, %p89
      %p91 = scmp.ne.s32.totalorder %s79, %s80
      %p92 = scmp.eq.s32.totalorder %s28, 2
      %p93 = por %p91, %p92
      %p95 = scmp.ne.s32.totalorder %s80, %s94
      %p96 = scmp.eq.s32.totalorder %s28, 0
      %p97 = por %p95, %p96
      %s99 = sadd.s32 %s98, 1
      %p102 = scmp.eq.s32.totalorder %s22, 2
      %p103 = scmp.ne.s32.totalorder %s98, %s100
      %p104 = scmp.eq.s32.totalorder %s22, 0
      %p105 = por %p103, %p104
      %p106 = scmp.ne.s32.totalorder %s98, %s100
      %p107 = scmp.eq.s32.totalorder %s27, 2
      %p108 = por %p106, %p107
      %p109 = scmp.ne.s32.totalorder %s100, %s101
      %p110 = scmp.eq.s32.totalorder %s27, 0
      %p111 = por %p109, %p110
      %p112 = scmp.ne.s32.totalorder %s100, %s101
      %p113 = scmp.eq.s32.totalorder %s28, 2
      %p114 = por %p112, %p113
      %p116 = scmp.ne.s32.totalorder %s101, %s115
      %p117 = scmp.eq.s32.totalorder %s28, 0
      %p118 = por %p116, %p117
      %s119 = ssub.s32 %s22, %s29
      %p120 = scmp.eq.s32.totalorder %s119, 0
      %s122 = sadd.s32 %s121, 1
      %s123 = scalar_select %p120, %s121, %s122
      %p126 = pneg %p120
      %p127 = scmp.eq.s32.totalorder %s22, 2
      %p128 = por %p126, %p127
      %p129 = scmp.ne.s32.totalorder %s121, %s124
      %p130 = scmp.eq.s32.totalorder %s22, 0
      %p131 = por %p129, %p130
      %p132 = scmp.ne.s32.totalorder %s121, %s124
      %p133 = scmp.eq.s32.totalorder %s27, 2
      %p134 = por %p132, %p133
      %p135 = scmp.ne.s32.totalorder %s124, %s125
      %p136 = scmp.eq.s32.totalorder %s27, 0
      %p137 = por %p135, %p136
      %p138 = scmp.ne.s32.totalorder %s124, %s125
      %p139 = scmp.eq.s32.totalorder %s28, 2
      %p140 = por %p138, %p139
      %p142 = scmp.ne.s32.totalorder %s125, %s141
      %p143 = scmp.eq.s32.totalorder %s28, 0
      %p144 = por %p142, %p143
      %s145 = ssub.s32 %s22, %s29
      %p146 = scmp.eq.s32.totalorder %s145, 0
      %s148 = sadd.s32 %s147, 1
      %s149 = scalar_select %p146, %s147, %s148
      %p152 = pneg %p146
      %p153 = scmp.eq.s32.totalorder %s22, 2
      %p154 = por %p152, %p153
      %p155 = scmp.ne.s32.totalorder %s147, %s150
      %p156 = scmp.eq.s32.totalorder %s22, 0
      %p157 = por %p155, %p156
      %p158 = scmp.ne.s32.totalorder %s147, %s150
      %p159 = scmp.eq.s32.totalorder %s27, 2
      %p160 = por %p158, %p159
      %p161 = scmp.ne.s32.totalorder %s150, %s151
      %p162 = scmp.eq.s32.totalorder %s27, 0
      %p163 = por %p161, %p162
      %p164 = scmp.ne.s32.totalorder %s150, %s151
      %p165 = scmp.eq.s32.totalorder %s28, 2
      %p166 = por %p164, %p165
      %p168 = scmp.ne.s32.totalorder %s151, %s167
      %p169 = scmp.eq.s32.totalorder %s28, 0
      %p170 = por %p168, %p169
      %p171 = scmp.le.s32.totalorder 1, %s22
      %p172 = scmp.lt.s32.totalorder %s22, 4
      %p173 = pnand %p171, %p172
      %p174 = pneg %p173
      // Predicated region
      $region9: #{tpu_custom_call.1} parent=5 // pred_check
        _
      $region10: #{tpu_custom_call.1} parent=5 // pred_check_branch
        %176 = sbr.rel (%p173) target = $region12
      $region11: #{tpu_custom_call.1} parent=5 // pred_region
        %s177 = ssub.s32 %s22, 1
        // Predicated region
        $region13: #{tpu_custom_call.1} parent=11 // pred_check
          %p178 = pneg %p69
        $region14: #{tpu_custom_call.1} parent=11 // pred_check_branch
          %180 = sbr.rel (%p178) target = $region16
        $region15: #{tpu_custom_call.1} parent=11 // pred_region
          %s182 = ssub.s32 1024, 1024
          %183 = vsyncadd [#allocation6], %s182
          %s184 = sshll.u32 [#allocation5], 4
          %s185 = int_to_ptr.vmem [resolvable:$true] %s184
          %190 = dma.hbm_to_vmem [thread:$0]  %s1, 1024, %s185, [#allocation6], 64, 64, 4
        $region16: #{tpu_custom_call.1} parent=11 // pred_fallthru
          _
        // Predicated region
        $region17: #{tpu_custom_call.1} parent=11 // pred_check
          %p191 = pneg %p90
        $region18: #{tpu_custom_call.1} parent=11 // pred_check_branch
          %193 = sbr.rel (%p191) target = $region20
        $region19: #{tpu_custom_call.1} parent=11 // pred_region
          %s195 = ssub.s32 1024, 1024
          %196 = vsyncadd [#allocation6], %s195
          %s197 = sshll.u32 [#allocation7], 4
          %s198 = int_to_ptr.vmem [resolvable:$true] %s197
          %203 = dma.hbm_to_vmem [thread:$0]  %s2, 1024, %s198, [#allocation6], 64, 64, 4
        $region20: #{tpu_custom_call.1} parent=11 // pred_fallthru
          _
        // Predicated region
        $region21: #{tpu_custom_call.1} parent=11 // pred_check
          %p204 = pneg %p111
        $region22: #{tpu_custom_call.1} parent=11 // pred_check_branch
          %206 = sbr.rel (%p204) target = $region24
        $region23: #{tpu_custom_call.1} parent=11 // pred_region
          _
        $region24: #{tpu_custom_call.1} parent=11 // pred_fallthru
          _
      $region12: #{tpu_custom_call.1} parent=5 // pred_fallthru
        _
      %p207 = scmp.lt.s32.totalorder %s22, 3
      // Predicated region
      $region25: #{tpu_custom_call.1} parent=5 // pred_check
        %p208 = pneg %p207
      $region26: #{tpu_custom_call.1} parent=5 // pred_check_branch
        %210 = sbr.rel (%p208) target = $region28
      $region27: #{tpu_custom_call.1} parent=5 // pred_region
        // Predicated region
        $region29: #{tpu_custom_call.1} parent=27 // pred_check
          %p211 = pneg %p42
        $region30: #{tpu_custom_call.1} parent=27 // pred_check_branch
          %213 = sbr.rel (%p211) target = $region32
        $region31: #{tpu_custom_call.1} parent=27 // pred_region
          %s214 = sand.u32 %s32, 1
          %s215 = scalar_lea.sflag [#allocation3], %s214
          %s216 = sand.u32 %s32, 1
          %s217 = smul.addr %s216, 64
          %s218 = scalar_lea.vmem [#allocation2], %s217
          %s219 = smul.u32 16, %s22
          %s221 = ssub.s32 1024, 1024
          %222 = vsyncadd %s215, %s221
          %s223 = smul.addr %s219, 64
          %s224 = scalar_lea.hbm %s0, %s223
          %s225 = sshll.u32 %s218, 4
          %s226 = int_to_ptr.vmem [resolvable:$true] %s225
          %231 = dma.hbm_to_vmem [thread:$0]  %s224, 1024, %s226, %s215, 64, 64, 4
        $region32: #{tpu_custom_call.1} parent=27 // pred_fallthru
          _
      $region28: #{tpu_custom_call.1} parent=5 // pred_fallthru
        _
      %p232 = scmp.le.s32.totalorder 1, %s22
      %p233 = scmp.lt.s32.totalorder %s22, 4
      %p234 = pnand %p232, %p233
      %p235 = pneg %p234
      // Predicated region
      $region33: #{tpu_custom_call.1} parent=5 // pred_check
        _
      $region34: #{tpu_custom_call.1} parent=5 // pred_check_branch
        %237 = sbr.rel (%p234) target = $region36
      $region35: #{tpu_custom_call.1} parent=5 // pred_region
        %s238 = ssub.s32 %s22, 1
        %s239 = sand.u32 %s35, 1
        %s240 = scalar_lea.sflag [#allocation3], %s239
        %s241 = sand.u32 %s35, 1
        %s242 = smul.addr %s241, 64
        %s243 = scalar_lea.vmem [#allocation2], %s242
        // Predicated region
        $region37: #{tpu_custom_call.1} parent=35 // pred_check
          %p244 = pneg %p48
        $region38: #{tpu_custom_call.1} parent=35 // pred_check_branch
          %246 = sbr.rel (%p244) target = $region40
        $region39: #{tpu_custom_call.1} parent=35 // pred_region
          %247 = dma.done %s240, 1024
        $region40: #{tpu_custom_call.1} parent=35 // pred_fallthru
          _
        // Predicated region
        $region41: #{tpu_custom_call.1} parent=35 // pred_check
          %p248 = pneg %p69
        $region42: #{tpu_custom_call.1} parent=35 // pred_check_branch
          %250 = sbr.rel (%p248) target = $region44
        $region43: #{tpu_custom_call.1} parent=35 // pred_region
          %251 = dma.done [#allocation6], 1024
        $region44: #{tpu_custom_call.1} parent=35 // pred_fallthru
          _
        // Predicated region
        $region45: #{tpu_custom_call.1} parent=35 // pred_check
          %p252 = pneg %p90
        $region46: #{tpu_custom_call.1} parent=35 // pred_check_branch
          %254 = sbr.rel (%p252) target = $region48
        $region47: #{tpu_custom_call.1} parent=35 // pred_region
          %255 = dma.done [#allocation6], 1024
        $region48: #{tpu_custom_call.1} parent=35 // pred_fallthru
          _
        %s256 = sand.u32 %s35, 1
        %s257 = scalar_lea.sflag [#allocation3], %s256
        %s258 = sand.u32 %s35, 1
        %s259 = smul.addr %s258, 64
        %s260 = scalar_lea.vmem [#allocation2], %s259
        %p261 = pneg %p48
        %p262 = pneg %p45
        %p263 = pneg %p69
        %p264 = pneg %p66
        %p265 = pneg %p90
        %p266 = pneg %p87
        %p267 = pneg %p111
        %p268 = pneg %p108
        %p269 = pneg %p137
        %p270 = pneg %p134
        %s271 = sand.u32 %s124, 1
        %s272 = scalar_lea.sflag [#allocation4], %s271
        %s273 = sand.u32 %s124, 1
        %s274 = smul.addr %s273, 64
        %s275 = scalar_lea.vmem [#allocation8], %s274
        %p276 = pneg %p163
        %p277 = pneg %p160
        %s278 = sand.u32 %s150, 1
        %s279 = scalar_lea.sflag [#allocation10], %s278
        %s280 = sand.u32 %s150, 1
        %s281 = smul.addr %s280, 128
        %s282 = scalar_lea.vmem [#allocation9], %s281
        %s283 = smul.u32 16, %s27
        %s284 = smul.u32 16, %s27
        %s285 = smul.u32 16, %s27
        %v287 = vld [vmem:[%s243] sm:$0xf]
        %v288 = vld [vmem:[%s243 + $0x4] sm:$0xf]
        %v289 = vld [vmem:[%s243 + $0x8] sm:$0xf]
        %v290 = vld [vmem:[%s243 + $0xc] sm:$0xf]
        %v291 = vld [vmem:[%s243 + $0x10] sm:$0xf]
        %v292 = vld [vmem:[%s243 + $0x14] sm:$0xf]
        %v293 = vld [vmem:[%s243 + $0x18] sm:$0xf]
        %v294 = vld [vmem:[%s243 + $0x1c] sm:$0xf]
        %v295 = vld [vmem:[%s243 + $0x20] sm:$0xf]
        %v296 = vld [vmem:[%s243 + $0x24] sm:$0xf]
        %v297 = vld [vmem:[%s243 + $0x28] sm:$0xf]
        %v298 = vld [vmem:[%s243 + $0x2c] sm:$0xf]
        %v299 = vld [vmem:[%s243 + $0x30] sm:$0xf]
        %v300 = vld [vmem:[%s243 + $0x34] sm:$0xf]
        %v301 = vld [vmem:[%s243 + $0x38] sm:$0xf]
        %v302 = vld [vmem:[%s243 + $0x3c] sm:$0xf]
        %v303 = vld [vmem:[#allocation5] sm:$0xf]
        %v304 = vld [vmem:[#allocation5 + $0x4] sm:$0xf]
        %v305 = vld [vmem:[#allocation5 + $0x8] sm:$0xf]
        %v306 = vld [vmem:[#allocation5 + $0xc] sm:$0xf]
        %v307 = vld [vmem:[#allocation5 + $0x10] sm:$0xf]
        %v308 = vld [vmem:[#allocation5 + $0x14] sm:$0xf]
        %v309 = vld [vmem:[#allocation5 + $0x18] sm:$0xf]
        %v310 = vld [vmem:[#allocation5 + $0x1c] sm:$0xf]
        %v311 = vld [vmem:[#allocation5 + $0x20] sm:$0xf]
        %v312 = vld [vmem:[#allocation5 + $0x24] sm:$0xf]
        %v313 = vld [vmem:[#allocation5 + $0x28] sm:$0xf]
        %v314 = vld [vmem:[#allocation5 + $0x2c] sm:$0xf]
        %v315 = vld [vmem:[#allocation5 + $0x30] sm:$0xf]
        %v316 = vld [vmem:[#allocation5 + $0x34] sm:$0xf]
        %v317 = vld [vmem:[#allocation5 + $0x38] sm:$0xf]
        %v318 = vld [vmem:[#allocation5 + $0x3c] sm:$0xf]
        %v335 = vunpack.c.l.b16 %v287
        %v336 = vunpack.c.l.b16 %v288
        %v337 = vunpack.c.l.b16 %v289
        %v338 = vunpack.c.l.b16 %v290
        %v339 = vunpack.c.l.b16 %v291
        %v340 = vunpack.c.l.b16 %v292
        %v341 = vunpack.c.l.b16 %v293
        %v342 = vunpack.c.l.b16 %v294
        %v343 = vunpack.c.l.b16 %v295
        %v344 = vunpack.c.l.b16 %v296
        %v345 = vunpack.c.l.b16 %v297
        %v346 = vunpack.c.l.b16 %v298
        %v347 = vunpack.c.l.b16 %v299
        %v348 = vunpack.c.l.b16 %v300
        %v349 = vunpack.c.l.b16 %v301
        %v350 = vunpack.c.l.b16 %v302
        %v351 = vpack.c.b16 %v336, %v335
        %v352 = vpack.c.b16 %v338, %v337
        %v353 = vpack.c.b16 %v340, %v339
        %v354 = vpack.c.b16 %v342, %v341
        %v355 = vpack.c.b16 %v344, %v343
        %v356 = vpack.c.b16 %v346, %v345
        %v357 = vpack.c.b16 %v348, %v347
        %v358 = vpack.c.b16 %v350, %v349
        %v383 = vunpack.c.l.b16 %v303
        %v384 = vunpack.c.l.b16 %v304
        %v385 = vunpack.c.l.b16 %v305
        %v386 = vunpack.c.l.b16 %v306
        %v387 = vunpack.c.l.b16 %v307
        %v388 = vunpack.c.l.b16 %v308
        %v389 = vunpack.c.l.b16 %v309
        %v390 = vunpack.c.l.b16 %v310
        %v391 = vunpack.c.l.b16 %v311
        %v392 = vunpack.c.l.b16 %v312
        %v393 = vunpack.c.l.b16 %v313
        %v394 = vunpack.c.l.b16 %v314
        %v395 = vunpack.c.l.b16 %v315
        %v396 = vunpack.c.l.b16 %v316
        %v397 = vunpack.c.l.b16 %v317
        %v398 = vunpack.c.l.b16 %v318
        %v399 = vpack.c.b16 %v384, %v383
        %v400 = vpack.c.b16 %v386, %v385
        %v401 = vpack.c.b16 %v388, %v387
        %v402 = vpack.c.b16 %v390, %v389
        %v403 = vpack.c.b16 %v392, %v391
        %v404 = vpack.c.b16 %v394, %v393
        %v405 = vpack.c.b16 %v396, %v395
        %v406 = vpack.c.b16 %v398, %v397
        %415 = vmatprep.subr.bf16.mxu0 0
        %416 = vmatpush1.bf16.msra.mxu0 %v399
        %417 = vmatprep.subr.bf16.mxu0 0
        %418 = vmatpush1.bf16.msra.mxu0 %v400
        %419 = vmatprep.subr.bf16.mxu0 0
        %420 = vmatpush1.bf16.msra.mxu0 %v401
        %421 = vmatprep.subr.bf16.mxu0 0
        %422 = vmatpush1.bf16.msra.mxu0 %v402
        %423 = vmatprep.subr.bf16.mxu0 0
        %424 = vmatpush1.bf16.msra.mxu0 %v403
        %425 = vmatprep.subr.bf16.mxu0 0
        %426 = vmatpush1.bf16.msra.mxu0 %v404
        %427 = vmatprep.subr.bf16.mxu0 0
        %428 = vmatpush1.bf16.msra.mxu0 %v405
        %429 = vmatprep.subr.bf16.mxu0 0
        %430 = vmatpush1.bf16.msra.mxu0 %v406
        %431 = vmatprep.subr.bf16.mxu0 0
        %432 = vmatpush1.bf16.msra.mxu0 0
        %433 = vmatprep.subr.bf16.mxu0 0
        %434 = vmatpush1.bf16.msra.mxu0 0
        %435 = vmatprep.subr.bf16.mxu0 0
        %436 = vmatpush1.bf16.msra.mxu0 0
        %437 = vmatprep.subr.bf16.mxu0 0
        %438 = vmatpush1.bf16.msra.mxu0 0
        %439 = vmatprep.subr.bf16.mxu0 0
        %440 = vmatpush1.bf16.msra.mxu0 0
        %441 = vmatprep.subr.bf16.mxu0 0
        %442 = vmatpush1.bf16.msra.mxu0 0
        %443 = vmatprep.subr.bf16.mxu0 0
        %444 = vmatpush1.bf16.msra.mxu0 0
        %445 = vmatprep.subr.bf16.mxu0 0
        %446 = vmatpush1.bf16.msra.mxu0 0
        %447 = vmatprep.mubr.bf16.mxu0 0
        %448 = vmatmul.mubr.bf16.gmra.mrb[0].mxu0 %v351
        %v449 = vpop.f32.mrb[0].mxu0
        %v450 = vadd.f32 0.0, %v449
        %v451 = vpop.f32.mrb[0].mxu0
        %v452 = vpop.f32.mrb[0].mxu0
        %v453 = vadd.f32 0.0, %v452
        %v454 = vpop.f32.mrb[0].mxu0
        %455 = vmatprep.mubr.bf16.mxu0 0
        %456 = vmatmul.mubr.bf16.gmra.mrb[0].mxu0 %v352
        %v457 = vpop.f32.mrb[0].mxu0
        %v458 = vadd.f32 0.0, %v457
        %v459 = vpop.f32.mrb[0].mxu0
        %v460 = vpop.f32.mrb[0].mxu0
        %v461 = vadd.f32 0.0, %v460
        %v462 = vpop.f32.mrb[0].mxu0
        %463 = vmatprep.mubr.bf16.mxu0 0
        %464 = vmatmul.mubr.bf16.gmra.mrb[0].mxu0 %v353
        %v465 = vpop.f32.mrb[0].mxu0
        %v466 = vadd.f32 0.0, %v465
        %v467 = vpop.f32.mrb[0].mxu0
        %v468 = vpop.f32.mrb[0].mxu0
        %v469 = vadd.f32 0.0, %v468
        %v470 = vpop.f32.mrb[0].mxu0
        %471 = vmatprep.mubr.bf16.mxu0 0
        %472 = vmatmul.mubr.bf16.gmra.mrb[0].mxu0 %v354
        %v473 = vpop.f32.mrb[0].mxu0
        %v474 = vadd.f32 0.0, %v473
        %v475 = vpop.f32.mrb[0].mxu0
        %v476 = vpop.f32.mrb[0].mxu0
        %v477 = vadd.f32 0.0, %v476
        %v478 = vpop.f32.mrb[0].mxu0
        %479 = vmatprep.mubr.bf16.mxu0 0
        %480 = vmatmul.mubr.bf16.gmra.mrb[0].mxu0 %v355
        %v481 = vpop.f32.mrb[0].mxu0
        %v482 = vadd.f32 0.0, %v481
        %v483 = vpop.f32.mrb[0].mxu0
        %v484 = vpop.f32.mrb[0].mxu0
        %v485 = vadd.f32 0.0, %v484
        %v486 = vpop.f32.mrb[0].mxu0
        %487 = vmatprep.mubr.bf16.mxu0 0
        %488 = vmatmul.mubr.bf16.gmra.mrb[0].mxu0 %v356
        %v489 = vpop.f32.mrb[0].mxu0
        %v490 = vadd.f32 0.0, %v489
        %v491 = vpop.f32.mrb[0].mxu0
        %v492 = vpop.f32.mrb[0].mxu0
        %v493 = vadd.f32 0.0, %v492
        %v494 = vpop.f32.mrb[0].mxu0
        %495 = vmatprep.mubr.bf16.mxu0 0
        %496 = vmatmul.mubr.bf16.gmra.mrb[0].mxu0 %v357
        %v497 = vpop.f32.mrb[0].mxu0
        %v498 = vadd.f32 0.0, %v497
        %v499 = vpop.f32.mrb[0].mxu0
        %v500 = vpop.f32.mrb[0].mxu0
        %v501 = vadd.f32 0.0, %v500
        %v502 = vpop.f32.mrb[0].mxu0
        %503 = vmatprep.mubr.bf16.mxu0 0
        %504 = vmatmul.mubr.bf16.gmra.mrb[0].mxu0 %v358
        %v505 = vpop.f32.mrb[0].mxu0
        %v506 = vadd.f32 0.0, %v505
        %v507 = vpop.f32.mrb[0].mxu0
        %v508 = vpop.f32.mrb[0].mxu0
        %v509 = vadd.f32 0.0, %v508
        %v510 = vpop.f32.mrb[0].mxu0
        %511 = vdwg.mxu0
        %v512 = vpack.c.bf16 %v453, %v450
        %v513 = vpack.c.bf16 %v461, %v458
        %v514 = vpack.c.bf16 %v469, %v466
        %v515 = vpack.c.bf16 %v477, %v474
        %v516 = vpack.c.bf16 %v485, %v482
        %v517 = vpack.c.bf16 %v493, %v490
        %v518 = vpack.c.bf16 %v501, %v498
        %v519 = vpack.c.bf16 %v509, %v506
        %v528 = vunpack.c.l.b16 %v512
        %v529 = vunpack.c.h.b16 %v512
        %v530 = vunpack.c.l.b16 %v513
        %v531 = vunpack.c.h.b16 %v513
        %v532 = vunpack.c.l.b16 %v514
        %v533 = vunpack.c.h.b16 %v514
        %v534 = vunpack.c.l.b16 %v515
        %v535 = vunpack.c.h.b16 %v515
        %v536 = vunpack.c.l.b16 %v516
        %v537 = vunpack.c.h.b16 %v516
        %v538 = vunpack.c.l.b16 %v517
        %v539 = vunpack.c.h.b16 %v517
        %v540 = vunpack.c.l.b16 %v518
        %v541 = vunpack.c.h.b16 %v518
        %v542 = vunpack.c.l.b16 %v519
        %v543 = vunpack.c.h.b16 %v519
        %v544 = vpack.c.b16 %v528, %v528
        %v545 = vpack.c.b16 %v529, %v529
        %v546 = vpack.c.b16 %v530, %v530
        %v547 = vpack.c.b16 %v531, %v531
        %v548 = vpack.c.b16 %v532, %v532
        %v549 = vpack.c.b16 %v533, %v533
        %v550 = vpack.c.b16 %v534, %v534
        %v551 = vpack.c.b16 %v535, %v535
        %v552 = vpack.c.b16 %v536, %v536
        %v553 = vpack.c.b16 %v537, %v537
        %v554 = vpack.c.b16 %v538, %v538
        %v555 = vpack.c.b16 %v539, %v539
        %v556 = vpack.c.b16 %v540, %v540
        %v557 = vpack.c.b16 %v541, %v541
        %v558 = vpack.c.b16 %v542, %v542
        %v559 = vpack.c.b16 %v543, %v543
        %576 = vst [vmem:[%s275] sm:$0xf] %v544
        %577 = vst [vmem:[%s275 + $0x4] sm:$0xf] %v545
        %578 = vst [vmem:[%s275 + $0x8] sm:$0xf] %v546
        %579 = vst [vmem:[%s275 + $0xc] sm:$0xf] %v547
        %580 = vst [vmem:[%s275 + $0x10] sm:$0xf] %v548
        %581 = vst [vmem:[%s275 + $0x14] sm:$0xf] %v549
        %582 = vst [vmem:[%s275 + $0x18] sm:$0xf] %v550
        %583 = vst [vmem:[%s275 + $0x1c] sm:$0xf] %v551
        %584 = vst [vmem:[%s275 + $0x20] sm:$0xf] %v552
        %585 = vst [vmem:[%s275 + $0x24] sm:$0xf] %v553
        %586 = vst [vmem:[%s275 + $0x28] sm:$0xf] %v554
        %587 = vst [vmem:[%s275 + $0x2c] sm:$0xf] %v555
        %588 = vst [vmem:[%s275 + $0x30] sm:$0xf] %v556
        %589 = vst [vmem:[%s275 + $0x34] sm:$0xf] %v557
        %590 = vst [vmem:[%s275 + $0x38] sm:$0xf] %v558
        %591 = vst [vmem:[%s275 + $0x3c] sm:$0xf] %v559
        %v592 = vld [vmem:[#allocation7] sm:$0xf]
        %v593 = vld [vmem:[#allocation7 + $0x4] sm:$0xf]
        %v594 = vld [vmem:[#allocation7 + $0x8] sm:$0xf]
        %v595 = vld [vmem:[#allocation7 + $0xc] sm:$0xf]
        %v596 = vld [vmem:[#allocation7 + $0x10] sm:$0xf]
        %v597 = vld [vmem:[#allocation7 + $0x14] sm:$0xf]
        %v598 = vld [vmem:[#allocation7 + $0x18] sm:$0xf]
        %v599 = vld [vmem:[#allocation7 + $0x1c] sm:$0xf]
        %v600 = vld [vmem:[#allocation7 + $0x20] sm:$0xf]
        %v601 = vld [vmem:[#allocation7 + $0x24] sm:$0xf]
        %v602 = vld [vmem:[#allocation7 + $0x28] sm:$0xf]
        %v603 = vld [vmem:[#allocation7 + $0x2c] sm:$0xf]
        %v604 = vld [vmem:[#allocation7 + $0x30] sm:$0xf]
        %v605 = vld [vmem:[#allocation7 + $0x34] sm:$0xf]
        %v606 = vld [vmem:[#allocation7 + $0x38] sm:$0xf]
        %v607 = vld [vmem:[#allocation7 + $0x3c] sm:$0xf]
        %v608 = vld [vmem:[%s3] sm:$0x1]
        %v610 = vlaneseq
        %v611 = vshrl.u32 %v610, 7
        %v612 = vsub.s32 0, %v611
        %v613 = vrot.slane %v608, %v612
        %v631 = vunpack.c.l.b16 %v592
        %v632 = vunpack.c.l.b16 %v593
        %v633 = vunpack.c.l.b16 %v594
        %v634 = vunpack.c.l.b16 %v595
        %v635 = vunpack.c.l.b16 %v596
        %v636 = vunpack.c.l.b16 %v597
        %v637 = vunpack.c.l.b16 %v598
        %v638 = vunpack.c.l.b16 %v599
        %v639 = vunpack.c.l.b16 %v600
        %v640 = vunpack.c.l.b16 %v601
        %v641 = vunpack.c.l.b16 %v602
        %v642 = vunpack.c.l.b16 %v603
        %v643 = vunpack.c.l.b16 %v604
        %v644 = vunpack.c.l.b16 %v605
        %v645 = vunpack.c.l.b16 %v606
        %v646 = vunpack.c.l.b16 %v607
        %v647 = vpack.c.b16 %v632, %v631
        %v648 = vpack.c.b16 %v634, %v633
        %v649 = vpack.c.b16 %v636, %v635
        %v650 = vpack.c.b16 %v638, %v637
        %v651 = vpack.c.b16 %v640, %v639
        %v652 = vpack.c.b16 %v642, %v641
        %v653 = vpack.c.b16 %v644, %v643
        %v654 = vpack.c.b16 %v646, %v645
        %663 = vmatprep.subr.bf16.mxu0 0
        %664 = vmatpush1.bf16.msra.mxu0 %v647
        %665 = vmatprep.subr.bf16.mxu0 0
        %666 = vmatpush1.bf16.msra.mxu0 %v648
        %667 = vmatprep.subr.bf16.mxu0 0
        %668 = vmatpush1.bf16.msra.mxu0 %v649
        %669 = vmatprep.subr.bf16.mxu0 0
        %670 = vmatpush1.bf16.msra.mxu0 %v650
        %671 = vmatprep.subr.bf16.mxu0 0
        %672 = vmatpush1.bf16.msra.mxu0 %v651
        %673 = vmatprep.subr.bf16.mxu0 0
        %674 = vmatpush1.bf16.msra.mxu0 %v652
        %675 = vmatprep.subr.bf16.mxu0 0
        %676 = vmatpush1.bf16.msra.mxu0 %v653
        %677 = vmatprep.subr.bf16.mxu0 0
        %678 = vmatpush1.bf16.msra.mxu0 %v654
        %679 = vmatprep.subr.bf16.mxu0 0
        %680 = vmatpush1.bf16.msra.mxu0 0
        %681 = vmatprep.subr.bf16.mxu0 0
        %682 = vmatpush1.bf16.msra.mxu0 0
        %683 = vmatprep.subr.bf16.mxu0 0
        %684 = vmatpush1.bf16.msra.mxu0 0
        %685 = vmatprep.subr.bf16.mxu0 0
        %686 = vmatpush1.bf16.msra.mxu0 0
        %687 = vmatprep.subr.bf16.mxu0 0
        %688 = vmatpush1.bf16.msra.mxu0 0
        %689 = vmatprep.subr.bf16.mxu0 0
        %690 = vmatpush1.bf16.msra.mxu0 0
        %691 = vmatprep.subr.bf16.mxu0 0
        %692 = vmatpush1.bf16.msra.mxu0 0
        %693 = vmatprep.subr.bf16.mxu0 0
        %694 = vmatpush1.bf16.msra.mxu0 0
        %695 = vmatprep.mubr.bf16.mxu0 0
        %696 = vmatmul.mubr.bf16.gmra.mrb[0].mxu0 %v351
        %v697 = vpop.f32.mrb[0].mxu0
        %v698 = vadd.f32 %v613, %v697
        %v699 = vpop.f32.mrb[0].mxu0
        %v700 = vpop.f32.mrb[0].mxu0
        %v701 = vadd.f32 %v613, %v700
        %v702 = vpop.f32.mrb[0].mxu0
        %703 = vmatprep.mubr.bf16.mxu0 0
        %704 = vmatmul.mubr.bf16.gmra.mrb[0].mxu0 %v352
        %v705 = vpop.f32.mrb[0].mxu0
        %v706 = vadd.f32 %v613, %v705
        %v707 = vpop.f32.mrb[0].mxu0
        %v708 = vpop.f32.mrb[0].mxu0
        %v709 = vadd.f32 %v613, %v708
        %v710 = vpop.f32.mrb[0].mxu0
        %711 = vmatprep.mubr.bf16.mxu0 0
        %712 = vmatmul.mubr.bf16.gmra.mrb[0].mxu0 %v353
        %v713 = vpop.f32.mrb[0].mxu0
        %v714 = vadd.f32 %v613, %v713
        %v715 = vpop.f32.mrb[0].mxu0
        %v716 = vpop.f32.mrb[0].mxu0
        %v717 = vadd.f32 %v613, %v716
        %v718 = vpop.f32.mrb[0].mxu0
        %719 = vmatprep.mubr.bf16.mxu0 0
        %720 = vmatmul.mubr.bf16.gmra.mrb[0].mxu0 %v354
        %v721 = vpop.f32.mrb[0].mxu0
        %v722 = vadd.f32 %v613, %v721
        %v723 = vpop.f32.mrb[0].mxu0
        %v724 = vpop.f32.mrb[0].mxu0
        %v725 = vadd.f32 %v613, %v724
        %v726 = vpop.f32.mrb[0].mxu0
        %727 = vmatprep.mubr.bf16.mxu0 0
        %728 = vmatmul.mubr.bf16.gmra.mrb[0].mxu0 %v355
        %v729 = vpop.f32.mrb[0].mxu0
        %v730 = vadd.f32 %v613, %v729
        %v731 = vpop.f32.mrb[0].mxu0
        %v732 = vpop.f32.mrb[0].mxu0
        %v733 = vadd.f32 %v613, %v732
        %v734 = vpop.f32.mrb[0].mxu0
        %735 = vmatprep.mubr.bf16.mxu0 0
        %736 = vmatmul.mubr.bf16.gmra.mrb[0].mxu0 %v356
        %v737 = vpop.f32.mrb[0].mxu0
        %v738 = vadd.f32 %v613, %v737
        %v739 = vpop.f32.mrb[0].mxu0
        %v740 = vpop.f32.mrb[0].mxu0
        %v741 = vadd.f32 %v613, %v740
        %v742 = vpop.f32.mrb[0].mxu0
        %743 = vmatprep.mubr.bf16.mxu0 0
        %744 = vmatmul.mubr.bf16.gmra.mrb[0].mxu0 %v357
        %v745 = vpop.f32.mrb[0].mxu0
        %v746 = vadd.f32 %v613, %v745
        %v747 = vpop.f32.mrb[0].mxu0
        %v748 = vpop.f32.mrb[0].mxu0
        %v749 = vadd.f32 %v613, %v748
        %v750 = vpop.f32.mrb[0].mxu0
        %751 = vmatprep.mubr.bf16.mxu0 0
        %752 = vmatmul.mubr.bf16.gmra.mrb[0].mxu0 %v358
        %v753 = vpop.f32.mrb[0].mxu0
        %v754 = vadd.f32 %v613, %v753
        %v755 = vpop.f32.mrb[0].mxu0
        %v756 = vpop.f32.mrb[0].mxu0
        %v757 = vadd.f32 %v613, %v756
        %v758 = vpop.f32.mrb[0].mxu0
        %759 = vdwg.mxu0
        %760 = vst [vmem:[%s282] sm:$0xff] %v698
        %761 = vst [vmem:[%s282 + $0x8] sm:$0xff] %v701
        %762 = vst [vmem:[%s282 + $0x10] sm:$0xff] %v706
        %763 = vst [vmem:[%s282 + $0x18] sm:$0xff] %v709
        %764 = vst [vmem:[%s282 + $0x20] sm:$0xff] %v714
        %765 = vst [vmem:[%s282 + $0x28] sm:$0xff] %v717
        %766 = vst [vmem:[%s282 + $0x30] sm:$0xff] %v722
        %767 = vst [vmem:[%s282 + $0x38] sm:$0xff] %v725
        %768 = vst [vmem:[%s282 + $0x40] sm:$0xff] %v730
        %769 = vst [vmem:[%s282 + $0x48] sm:$0xff] %v733
        %770 = vst [vmem:[%s282 + $0x50] sm:$0xff] %v738
        %771 = vst [vmem:[%s282 + $0x58] sm:$0xff] %v741
        %772 = vst [vmem:[%s282 + $0x60] sm:$0xff] %v746
        %773 = vst [vmem:[%s282 + $0x68] sm:$0xff] %v749
        %774 = vst [vmem:[%s282 + $0x70] sm:$0xff] %v754
        %775 = vst [vmem:[%s282 + $0x78] sm:$0xff] %v757
        %s776 = sand.u32 %s124, 1
        %s777 = scalar_lea.sflag [#allocation4], %s776
        %s778 = sand.u32 %s124, 1
        %s779 = smul.addr %s778, 64
        %s780 = scalar_lea.vmem [#allocation8], %s779
        %s781 = sand.u32 %s150, 1
        %s782 = scalar_lea.sflag [#allocation10], %s781
        %s783 = sand.u32 %s150, 1
        %s784 = smul.addr %s783, 128
        %s785 = scalar_lea.vmem [#allocation9], %s784
        // Predicated region
        $region49: #{tpu_custom_call.1} parent=35 // pred_check
          %p786 = pneg %p134
        $region50: #{tpu_custom_call.1} parent=35 // pred_check_branch
          %788 = sbr.rel (%p786) target = $region52
        $region51: #{tpu_custom_call.1} parent=35 // pred_region
          %s789 = smul.u32 16, %s27
          %s791 = ssub.s32 1024, 1024
          %792 = vsyncadd %s777, %s791
          %s793 = smul.addr %s789, 64
          %s794 = scalar_lea.hbm %s4, %s793
          %s795 = sshll.u32 %s780, 4
          %s796 = int_to_ptr.vmem [resolvable:$true] %s795
          %801 = dma.vmem_to_hbm [thread:$0]  %s796, 1024, %s794, %s777, 64, 64, 4
        $region52: #{tpu_custom_call.1} parent=35 // pred_fallthru
          _
        // Predicated region
        $region53: #{tpu_custom_call.1} parent=35 // pred_check
          %p802 = pneg %p160
        $region54: #{tpu_custom_call.1} parent=35 // pred_check_branch
          %804 = sbr.rel (%p802) target = $region56
        $region55: #{tpu_custom_call.1} parent=35 // pred_region
          %s805 = smul.u32 16, %s27
          %s807 = ssub.s32 2048, 2048
          %808 = vsyncadd %s782, %s807
          %s809 = smul.addr %s805, 128
          %s810 = scalar_lea.hbm %s5, %s809
          %s811 = sshll.u32 %s785, 4
          %s812 = int_to_ptr.vmem [resolvable:$true] %s811
          %817 = dma.vmem_to_hbm [thread:$0]  %s812, 2048, %s810, %s782, 128, 128, 8
        $region56: #{tpu_custom_call.1} parent=35 // pred_fallthru
          _
      $region36: #{tpu_custom_call.1} parent=5 // pred_fallthru
        _
      %p818 = scmp.le.s32.totalorder 2, %s22
      // Predicated region
      $region57: #{tpu_custom_call.1} parent=5 // pred_check
        %p819 = pneg %p818
      $region58: #{tpu_custom_call.1} parent=5 // pred_check_branch
        %821 = sbr.rel (%p819) target = $region60
      $region59: #{tpu_custom_call.1} parent=5 // pred_region
        %s822 = ssub.s32 %s22, 2
        // Predicated region
        $region61: #{tpu_custom_call.1} parent=59 // pred_check
          %p823 = pneg %p140
        $region62: #{tpu_custom_call.1} parent=59 // pred_check_branch
          %825 = sbr.rel (%p823) target = $region64
        $region63: #{tpu_custom_call.1} parent=59 // pred_region
          %s826 = sand.u32 %s125, 1
          %s827 = scalar_lea.sflag [#allocation4], %s826
          %s828 = sand.u32 %s125, 1
          %s829 = smul.addr %s828, 64
          %s830 = scalar_lea.vmem [#allocation8], %s829
          %831 = dma.done %s827, 1024
        $region64: #{tpu_custom_call.1} parent=59 // pred_fallthru
          _
        // Predicated region
        $region65: #{tpu_custom_call.1} parent=59 // pred_check
          %p832 = pneg %p166
        $region66: #{tpu_custom_call.1} parent=59 // pred_check_branch
          %834 = sbr.rel (%p832) target = $region68
        $region67: #{tpu_custom_call.1} parent=59 // pred_region
          %s835 = sand.u32 %s151, 1
          %s836 = scalar_lea.sflag [#allocation10], %s835
          %s837 = sand.u32 %s151, 1
          %s838 = smul.addr %s837, 128
          %s839 = scalar_lea.vmem [#allocation9], %s838
          %840 = dma.done %s836, 2048
        $region68: #{tpu_custom_call.1} parent=59 // pred_fallthru
          _
      $region60: #{tpu_custom_call.1} parent=5 // pred_fallthru
        _
    $region6: #{tpu_custom_call.1} parent=1 // loop_footer
      %s26 = sadd.s32 1, %s22
    $region7: #{tpu_custom_call.1} parent=1 // loop_footer_branch
      %21 = sbr.rel target = $region3
    $region8: #{tpu_custom_call.1} parent=1 // loop_exit
      _
    %841 = vsyncpa [#allocation3], 1
    %s842 = scalar_lea.sflag [#allocation3], 1
    %843 = vsyncpa %s842, 1
    %844 = vsyncpa [#allocation6], 1
    %845 = vsyncpa [#allocation4], 1
    %s846 = scalar_lea.sflag [#allocation4], 1
    %847 = vsyncpa %s846, 1
    %848 = vsyncpa [#allocation10], 1
    %s849 = scalar_lea.sflag [#allocation10], 1
    %850 = vsyncpa %s849, 1

</llo_original>
